<compile_context>
chip_gen: v7x
topology: tpu7x:2x2x1
jax: 0.10.0
libtpu: 0.0.40
codegen_flags: <defaults>
</compile_context>

<pallas_src>
import functools

import jax
import jax.numpy as jnp
from jax.experimental import pallas as pl
from jax.experimental.pallas import tpu as pltpu

IN_FEATURES = 9 * 29        # 261
HIDDEN = 128
OUT_FEATURES = 192

DEFAULT_TM = 1024           # batch tile (multiple of 8); ~8 MiB total VMEM with
                            # double buffering -> fits scoped defaults on v5e/v6e/v7x


def _round_up(n, m):
    return ((n + m - 1) // m) * m


def encoder_kernel(x_ref, w1_ref, b1_ref, w2_ref, b2_ref, o_ref):
    # x tile: (TM, 261) f32 -> bf16 for the MXU (cast on VPU, f32 accumulation).
    x = x_ref[...].astype(jnp.bfloat16)
    h = jnp.dot(x, w1_ref[...], preferred_element_type=jnp.float32)
    h = jnp.maximum(h + b1_ref[...], 0.0)                       # bias + ReLU in f32
    y = jnp.dot(h.astype(jnp.bfloat16), w2_ref[...],
                preferred_element_type=jnp.float32)
    o_ref[...] = (y + b2_ref[...]).astype(o_ref.dtype)


@functools.partial(jax.jit, static_argnames=("tm",))
def encoder_forward(x, w1, b1, w2, b2, *, tm=DEFAULT_TM):
    """x: (B, 261) f32; w1: (261,128); b1: (128,); w2: (128,192); b2: (192,)."""
    B = x.shape[0]

    # Batch tile: cap at `tm`, round small batches up to a sublane multiple.
    TM = min(tm, _round_up(B, 8))
    grid = (pl.cdiv(B, TM),)

    # Cheap one-time weight prep (weights are tiny: ~100 KiB total).
    w1b = w1.astype(jnp.bfloat16)
    w2b = w2.astype(jnp.bfloat16)
    b1r = b1.reshape(1, HIDDEN).astype(jnp.float32)
    b2r = b2.reshape(1, OUT_FEATURES).astype(jnp.float32)

    cost = pl.CostEstimate(
        flops=2 * B * (IN_FEATURES * HIDDEN + HIDDEN * OUT_FEATURES),
        transcendentals=0,
        bytes_accessed=(x.size * 4 + w1b.size * 2 + w2b.size * 2
                        + b1r.size * 4 + b2r.size * 4
                        + B * OUT_FEATURES * 4),
    )

    out = pl.pallas_call(
        encoder_kernel,
        out_shape=jax.ShapeDtypeStruct((B, OUT_FEATURES), jnp.float32),
        grid=grid,
        in_specs=[
            pl.BlockSpec((TM, IN_FEATURES), lambda i: (i, 0)),       # x tile
            pl.BlockSpec((IN_FEATURES, HIDDEN), lambda i: (0, 0)),   # w1 (resident)
            pl.BlockSpec((1, HIDDEN), lambda i: (0, 0)),             # b1 (resident)
            pl.BlockSpec((HIDDEN, OUT_FEATURES), lambda i: (0, 0)),  # w2 (resident)
            pl.BlockSpec((1, OUT_FEATURES), lambda i: (0, 0)),       # b2 (resident)
        ],
        out_specs=pl.BlockSpec((TM, OUT_FEATURES), lambda i: (i, 0)),
        compiler_params=pltpu.CompilerParams(
            dimension_semantics=("parallel",),
            vmem_limit_bytes=32 << 20,
        ),
        cost_estimate=cost,
    )(x, w1b, b1r, w2b, b2r)

    return out


def init_params(key):
    # Deterministic init mimicking PyTorch nn.Linear default (uniform +/- 1/sqrt(fan_in)).
    k1, k2, k3, k4 = jax.random.split(key, 4)
    lim1 = 1.0 / jnp.sqrt(IN_FEATURES)
    lim2 = 1.0 / jnp.sqrt(HIDDEN)
    w1 = jax.random.uniform(k1, (IN_FEATURES, HIDDEN), jnp.float32, -lim1, lim1)
    b1 = jax.random.uniform(k2, (HIDDEN,), jnp.float32, -lim1, lim1)
    w2 = jax.random.uniform(k3, (HIDDEN, OUT_FEATURES), jnp.float32, -lim2, lim2)
    b2 = jax.random.uniform(k4, (OUT_FEATURES,), jnp.float32, -lim2, lim2)
    return w1, b1, w2, b2


if __name__ == "__main__":
    key = jax.random.PRNGKey(0)
    kx, kp = jax.random.split(key)
    B = 8
    x = jax.random.normal(kx, (B, IN_FEATURES), jnp.float32)
    w1, b1, w2, b2 = init_params(kp)

    out = encoder_forward(x, w1, b1, w2, b2)
    out = jax.block_until_ready(out)

    # Pure-JAX f32 reference; bf16 MXU operands -> loosened tolerance.
    ref = jnp.maximum(x @ w1 + b1[None, :], 0.0) @ w2 + b2[None, :]
    assert out.shape == (B, OUT_FEATURES)
    assert jnp.allclose(out, ref, atol=2e-2, rtol=2e-2), float(jnp.max(jnp.abs(out - ref)))
    print("KERNEL_OK")
</pallas_src>

<mosaic_0001>
module attributes {stable_mosaic.version = 11 : i64} {
  func.func @encoder_kernel(%arg0: i32, %arg1: memref<8x261xf32, #tpu.memory_space<vmem>>, %arg2: memref<261x128xbf16, #tpu.memory_space<vmem>>, %arg3: memref<1x128xf32, #tpu.memory_space<vmem>>, %arg4: memref<128x192xbf16, #tpu.memory_space<vmem>>, %arg5: memref<1x192xf32, #tpu.memory_space<vmem>>, %arg6: memref<8x192xf32, #tpu.memory_space<vmem>>) attributes {dimension_semantics = [#tpu.dimension_semantics<parallel>], iteration_bounds = array<i64: 1>, scalar_prefetch = 0 : i64, scratch_operands = 0 : i64, tpu.core_type = #tpu.core_type<tc>, window_params = [{transform_indices = @transform_0, window_bounds = array<i64: 8, 261>}, {pipeline_mode = #tpu.pipeline_mode<synchronous>, transform_indices = @transform_1, window_bounds = array<i64: 261, 128>}, {pipeline_mode = #tpu.pipeline_mode<synchronous>, transform_indices = @transform_2, window_bounds = array<i64: 1, 128>}, {pipeline_mode = #tpu.pipeline_mode<synchronous>, transform_indices = @transform_3, window_bounds = array<i64: 128, 192>}, {pipeline_mode = #tpu.pipeline_mode<synchronous>, transform_indices = @transform_4, window_bounds = array<i64: 1, 192>}, {transform_indices = @transform_5, window_bounds = array<i64: 8, 192>}]} {
    %c0 = arith.constant 0 : index
    %c0_0 = arith.constant 0 : index
    %0 = vector.load %arg1[%c0, %c0_0] : memref<8x261xf32, #tpu.memory_space<vmem>>, vector<8x261xf32>
    %1 = arith.truncf %0 : vector<8x261xf32> to vector<8x261xbf16>
    %c0_1 = arith.constant 0 : index
    %c0_2 = arith.constant 0 : index
    %2 = vector.load %arg2[%c0_1, %c0_2] : memref<261x128xbf16, #tpu.memory_space<vmem>>, vector<261x128xbf16>
    %cst = arith.constant dense<0.000000e+00> : vector<8x128xf32>
    %3 = tpu.matmul %1, %2, %cst {dimension_numbers = #tpu.dot_dimension_numbers<[1], [0], [0], [1], [0, 0, 1, 1], [], []>} : vector<8x261xbf16>, vector<261x128xbf16>, vector<8x128xf32> -> vector<8x128xf32>
    %c0_3 = arith.constant 0 : index
    %c0_4 = arith.constant 0 : index
    %4 = vector.load %arg3[%c0_3, %c0_4] : memref<1x128xf32, #tpu.memory_space<vmem>>, vector<1x128xf32>
    %5 = vector.broadcast %4 : vector<1x128xf32> to vector<8x128xf32>
    %6 = arith.addf %3, %5 : vector<8x128xf32>
    %cst_5 = arith.constant 0.000000e+00 : f32
    %7 = vector.broadcast %cst_5 : f32 to vector<8x128xf32>
    %8 = arith.maximumf %6, %7 : vector<8x128xf32>
    %9 = arith.truncf %8 : vector<8x128xf32> to vector<8x128xbf16>
    %c0_6 = arith.constant 0 : index
    %c0_7 = arith.constant 0 : index
    %10 = vector.load %arg4[%c0_6, %c0_7] : memref<128x192xbf16, #tpu.memory_space<vmem>>, vector<128x192xbf16>
    %cst_8 = arith.constant dense<0.000000e+00> : vector<8x192xf32>
    %11 = tpu.matmul %9, %10, %cst_8 {dimension_numbers = #tpu.dot_dimension_numbers<[1], [0], [0], [1], [0, 0, 1, 1], [], []>} : vector<8x128xbf16>, vector<128x192xbf16>, vector<8x192xf32> -> vector<8x192xf32>
    %c0_9 = arith.constant 0 : index
    %c0_10 = arith.constant 0 : index
    %12 = vector.load %arg5[%c0_9, %c0_10] : memref<1x192xf32, #tpu.memory_space<vmem>>, vector<1x192xf32>
    %13 = vector.broadcast %12 : vector<1x192xf32> to vector<8x192xf32>
    %14 = arith.addf %11, %13 : vector<8x192xf32>
    %c0_11 = arith.constant 0 : index
    %c0_12 = arith.constant 0 : index
    %15 = vector.load %arg6[%c0_11, %c0_12] : memref<8x192xf32, #tpu.memory_space<vmem>>, vector<8x192xf32>
    tpu.vector_store %arg6[%c0_11, %c0_12], %14 {strides = array<i32>} : memref<8x192xf32, #tpu.memory_space<vmem>>, vector<8x192xf32>,
    return
  }
  func.func @transform_0(%arg0: i32) -> (i32, i32) {
    %c0_i32 = arith.constant 0 : i32
    %c0_i32_0 = arith.constant 0 : i32
    return %arg0, %c0_i32 : i32, i32
  }
  func.func @transform_1(%arg0: i32) -> (i32, i32) {
    %c0_i32 = arith.constant 0 : i32
    %c0_i32_0 = arith.constant 0 : i32
    %c0_i32_1 = arith.constant 0 : i32
    return %c0_i32, %c0_i32_0 : i32, i32
  }
  func.func @transform_2(%arg0: i32) -> (i32, i32) {
    %c0_i32 = arith.constant 0 : i32
    %c0_i32_0 = arith.constant 0 : i32
    %c0_i32_1 = arith.constant 0 : i32
    return %c0_i32, %c0_i32_0 : i32, i32
  }
  func.func @transform_3(%arg0: i32) -> (i32, i32) {
    %c0_i32 = arith.constant 0 : i32
    %c0_i32_0 = arith.constant 0 : i32
    %c0_i32_1 = arith.constant 0 : i32
    return %c0_i32, %c0_i32_0 : i32, i32
  }
  func.func @transform_4(%arg0: i32) -> (i32, i32) {
    %c0_i32 = arith.constant 0 : i32
    %c0_i32_0 = arith.constant 0 : i32
    %c0_i32_1 = arith.constant 0 : i32
    return %c0_i32, %c0_i32_0 : i32, i32
  }
  func.func @transform_5(%arg0: i32) -> (i32, i32) {
    %c0_i32 = arith.constant 0 : i32
    %c0_i32_0 = arith.constant 0 : i32
    return %arg0, %c0_i32 : i32, i32
  }
}

</mosaic_0001>

<llo_original>
// kernel: encoder_forward.1
$region0: #{encoder_forward.1}
  #allocation0 [shape = 'u32[]', space=smem, size = 0x4, offset = 0x4, fixed_abs, tag = 'smem constant byte address 0x4 - core index']
  #allocation1 [shape = 'u32[144,128]{1,0:T(1,128)}', space=vmem, size = 0x12000, scoped, tag = 'internal scratch']
  %s0 = inlined_call_operand.vmem [shape: f32[8,261], index: 0, kind: input, shape index: {}]
  %s1 = inlined_call_operand.vmem [shape: bf16[261,128], index: 1, kind: input, shape index: {}]
  %s2 = inlined_call_operand.vmem [shape: f32[1,128], index: 2, kind: input, shape index: {}]
  %s3 = inlined_call_operand.vmem [shape: bf16[128,192], index: 3, kind: input, shape index: {}]
  %s4 = inlined_call_operand.vmem [shape: f32[1,192], index: 4, kind: input, shape index: {}]
  %s5 = inlined_call_operand.hbm [shape: f32[8,192], index: 5, kind: output, shape index: {}]
  %s6 = sld [smem:[#allocation0]]
  $region30: #{encoder_forward.1} parent=0
    _
  %s8 = ssub.s32 1, %s6
  %s9 = scalar_select 0, %s8, %s6
  $region1: #{encoder_forward.1} parent=0
    #allocation2 [shape = 'u8[8192]{0}', space=vmem, size = 0x2000, scoped, tag = 'output window, operand 0, single buffered']
    #allocation3 [shape = 's32[1]{0}', space=sflag, size = 0x4, scoped, tag = 'scoped memory for encoder_forward.1']
    %10 = vsyncpa [#allocation3], 0
    // Predicated region
    $region2: #{encoder_forward.1} parent=1 // pred_check
      _
    $region3: #{encoder_forward.1} parent=1 // pred_check_branch
      %12 = sbr.rel (0) target = $region5
    $region4: #{encoder_forward.1} parent=1 // pred_region
      _
    $region5: #{encoder_forward.1} parent=1 // pred_fallthru
      _
    // Predicated region
    $region6: #{encoder_forward.1} parent=1 // pred_check
      _
    $region7: #{encoder_forward.1} parent=1 // pred_check_branch
      %14 = sbr.rel (0) target = $region9
    $region8: #{encoder_forward.1} parent=1 // pred_region
      _
    $region9: #{encoder_forward.1} parent=1 // pred_fallthru
      _
    // Predicated region
    $region10: #{encoder_forward.1} parent=1 // pred_check
      _
    $region11: #{encoder_forward.1} parent=1 // pred_check_branch
      %16 = sbr.rel (0) target = $region13
    $region12: #{encoder_forward.1} parent=1 // pred_region
      _
    $region13: #{encoder_forward.1} parent=1 // pred_fallthru
      _
    // Predicated region
    $region14: #{encoder_forward.1} parent=1 // pred_check
      _
    $region15: #{encoder_forward.1} parent=1 // pred_check_branch
      %18 = sbr.rel (0) target = $region17
    $region16: #{encoder_forward.1} parent=1 // pred_region
      _
    $region17: #{encoder_forward.1} parent=1 // pred_fallthru
      _
    // Predicated region
    $region18: #{encoder_forward.1} parent=1 // pred_check
      _
    $region19: #{encoder_forward.1} parent=1 // pred_check_branch
      %20 = sbr.rel (0) target = $region21
    $region20: #{encoder_forward.1} parent=1 // pred_region
      _
    $region21: #{encoder_forward.1} parent=1 // pred_fallthru
      _
    %v22 = vld [vmem:[%s0] sm:$0xff]
    %v23 = vld [vmem:[%s0 + $0x8] sm:$0xff]
    %v24 = vld [vmem:[%s0 + $0x10] sm:$0xff]
    %v25 = vpack.c.bf16 %v22, %v22
    %v26 = vpack.c.bf16 %v23, %v23
    %v27 = vpack.c.bf16 %v24, %v24
    %v28 = vld [vmem:[%s1] sm:$0xf]
    %v29 = vld [vmem:[%s1 + $0x4] sm:$0xf]
    %v30 = vld [vmem:[%s1 + $0x8] sm:$0xf]
    %v31 = vld [vmem:[%s1 + $0xc] sm:$0xf]
    %v32 = vld [vmem:[%s1 + $0x10] sm:$0xf]
    %v33 = vld [vmem:[%s1 + $0x14] sm:$0xf]
    %v34 = vld [vmem:[%s1 + $0x18] sm:$0xf]
    %v35 = vld [vmem:[%s1 + $0x1c] sm:$0xf]
    %v36 = vld [vmem:[%s1 + $0x20] sm:$0xf]
    %v37 = vld [vmem:[%s1 + $0x24] sm:$0xf]
    %v38 = vld [vmem:[%s1 + $0x28] sm:$0xf]
    %v39 = vld [vmem:[%s1 + $0x2c] sm:$0xf]
    %v40 = vld [vmem:[%s1 + $0x30] sm:$0xf]
    %v41 = vld [vmem:[%s1 + $0x34] sm:$0xf]
    %v42 = vld [vmem:[%s1 + $0x38] sm:$0xf]
    %v43 = vld [vmem:[%s1 + $0x3c] sm:$0xf]
    %v44 = vld [vmem:[%s1 + $0x40] sm:$0xf]
    %v45 = vld [vmem:[%s1 + $0x44] sm:$0xf]
    %v46 = vld [vmem:[%s1 + $0x48] sm:$0xf]
    %v47 = vld [vmem:[%s1 + $0x4c] sm:$0xf]
    %v48 = vld [vmem:[%s1 + $0x50] sm:$0xf]
    %v49 = vld [vmem:[%s1 + $0x54] sm:$0xf]
    %v50 = vld [vmem:[%s1 + $0x58] sm:$0xf]
    %v51 = vld [vmem:[%s1 + $0x5c] sm:$0xf]
    %v52 = vld [vmem:[%s1 + $0x60] sm:$0xf]
    %v53 = vld [vmem:[%s1 + $0x64] sm:$0xf]
    %v54 = vld [vmem:[%s1 + $0x68] sm:$0xf]
    %v55 = vld [vmem:[%s1 + $0x6c] sm:$0xf]
    %v56 = vld [vmem:[%s1 + $0x70] sm:$0xf]
    %v57 = vld [vmem:[%s1 + $0x74] sm:$0xf]
    %v58 = vld [vmem:[%s1 + $0x78] sm:$0xf]
    %v59 = vld [vmem:[%s1 + $0x7c] sm:$0xf]
    %v60 = vld [vmem:[%s1 + $0x80] sm:$0x7]
    %v61 = vld [vmem:[%s2] sm:$0x1]
    %v63 = vlaneseq
    %v64 = vshrl.u32 %v63, 7
    %v65 = vsub.s32 0, %v64
    %v66 = vrot.slane %v61, %v65
    %v101 = vunpack.c.l.b16 %v28
    %v102 = vunpack.c.l.b16 %v29
    %v103 = vunpack.c.l.b16 %v30
    %v104 = vunpack.c.l.b16 %v31
    %v105 = vunpack.c.l.b16 %v32
    %v106 = vunpack.c.l.b16 %v33
    %v107 = vunpack.c.l.b16 %v34
    %v108 = vunpack.c.l.b16 %v35
    %v109 = vunpack.c.l.b16 %v36
    %v110 = vunpack.c.l.b16 %v37
    %v111 = vunpack.c.l.b16 %v38
    %v112 = vunpack.c.l.b16 %v39
    %v113 = vunpack.c.l.b16 %v40
    %v114 = vunpack.c.l.b16 %v41
    %v115 = vunpack.c.l.b16 %v42
    %v116 = vunpack.c.l.b16 %v43
    %v117 = vunpack.c.l.b16 %v44
    %v118 = vunpack.c.l.b16 %v45
    %v119 = vunpack.c.l.b16 %v46
    %v120 = vunpack.c.l.b16 %v47
    %v121 = vunpack.c.l.b16 %v48
    %v122 = vunpack.c.l.b16 %v49
    %v123 = vunpack.c.l.b16 %v50
    %v124 = vunpack.c.l.b16 %v51
    %v125 = vunpack.c.l.b16 %v52
    %v126 = vunpack.c.l.b16 %v53
    %v127 = vunpack.c.l.b16 %v54
    %v128 = vunpack.c.l.b16 %v55
    %v129 = vunpack.c.l.b16 %v56
    %v130 = vunpack.c.l.b16 %v57
    %v131 = vunpack.c.l.b16 %v58
    %v132 = vunpack.c.l.b16 %v59
    %v133 = vunpack.c.l.b16 %v60
    %v134 = vpack.c.b16 %v102, %v101
    %v135 = vpack.c.b16 %v104, %v103
    %v136 = vpack.c.b16 %v106, %v105
    %v137 = vpack.c.b16 %v108, %v107
    %v138 = vpack.c.b16 %v110, %v109
    %v139 = vpack.c.b16 %v112, %v111
    %v140 = vpack.c.b16 %v114, %v113
    %v141 = vpack.c.b16 %v116, %v115
    %v142 = vpack.c.b16 %v118, %v117
    %v143 = vpack.c.b16 %v120, %v119
    %v144 = vpack.c.b16 %v122, %v121
    %v145 = vpack.c.b16 %v124, %v123
    %v146 = vpack.c.b16 %v126, %v125
    %v147 = vpack.c.b16 %v128, %v127
    %v148 = vpack.c.b16 %v130, %v129
    %v149 = vpack.c.b16 %v132, %v131
    %v150 = vpack.c.b16 %v133, %v133
    %vm167 = vcmask 39936
    %v169 = vsel %vm167, %v27, 0
    %vm171 = vcmask 1041408
    %vm172 = vcmask 1042432
    %v173 = vsel %vm171, 4294967295, 65535
    %v174 = vsel %vm172, %v173, 0
    %v176 = vand.u32 %v150, %v174
    %178 = vmatprep.subr.bf16.mxu0 0
    %179 = vmatpush1.bf16.msra.mxu0 %v134
    %180 = vmatprep.subr.bf16.mxu0 0
    %181 = vmatpush1.bf16.msra.mxu0 %v135
    %182 = vmatprep.subr.bf16.mxu0 0
    %183 = vmatpush1.bf16.msra.mxu0 %v136
    %184 = vmatprep.subr.bf16.mxu0 0
    %185 = vmatpush1.bf16.msra.mxu0 %v137
    %186 = vmatprep.subr.bf16.mxu0 0
    %187 = vmatpush1.bf16.msra.mxu0 %v138
    %188 = vmatprep.subr.bf16.mxu0 0
    %189 = vmatpush1.bf16.msra.mxu0 %v139
    %190 = vmatprep.subr.bf16.mxu0 0
    %191 = vmatpush1.bf16.msra.mxu0 %v140
    %192 = vmatprep.subr.bf16.mxu0 0
    %193 = vmatpush1.bf16.msra.mxu0 %v141
    %194 = vmatprep.subr.bf16.mxu0 0
    %195 = vmatpush1.bf16.msra.mxu0 %v142
    %196 = vmatprep.subr.bf16.mxu0 0
    %197 = vmatpush1.bf16.msra.mxu0 %v143
    %198 = vmatprep.subr.bf16.mxu0 0
    %199 = vmatpush1.bf16.msra.mxu0 %v144
    %200 = vmatprep.subr.bf16.mxu0 0
    %201 = vmatpush1.bf16.msra.mxu0 %v145
    %202 = vmatprep.subr.bf16.mxu0 0
    %203 = vmatpush1.bf16.msra.mxu0 %v146
    %204 = vmatprep.subr.bf16.mxu0 0
    %205 = vmatpush1.bf16.msra.mxu0 %v147
    %206 = vmatprep.subr.bf16.mxu0 0
    %207 = vmatpush1.bf16.msra.mxu0 %v148
    %208 = vmatprep.subr.bf16.mxu0 0
    %209 = vmatpush1.bf16.msra.mxu0 %v149
    %210 = vmatprep.mubr.bf16.mxu0 %v26
    %211 = vmatmul.mubr.bf16.gmra.mrb[0].mxu0 %v25
    %v212 = vpop.f32.mrb[0].mxu0
    %v213 = vadd.f32 %v66, %v212
    %v214 = vpop.f32.mrb[0].mxu0
    %v215 = vpop.f32.mrb[0].mxu0
    %v216 = vpop.f32.mrb[0].mxu0
    %217 = vdwg.mxu0
    %218 = vmatprep.subr.bf16.mxu0 0
    %219 = vmatpush1.bf16.msra.mxu0 %v176
    %220 = vmatprep.subr.bf16.mxu0 0
    %221 = vmatpush1.bf16.msra.mxu0 0
    %222 = vmatprep.subr.bf16.mxu0 0
    %223 = vmatpush1.bf16.msra.mxu0 0
    %224 = vmatprep.subr.bf16.mxu0 0
    %225 = vmatpush1.bf16.msra.mxu0 0
    %226 = vmatprep.subr.bf16.mxu0 0
    %227 = vmatpush1.bf16.msra.mxu0 0
    %228 = vmatprep.subr.bf16.mxu0 0
    %229 = vmatpush1.bf16.msra.mxu0 0
    %230 = vmatprep.subr.bf16.mxu0 0
    %231 = vmatpush1.bf16.msra.mxu0 0
    %232 = vmatprep.subr.bf16.mxu0 0
    %233 = vmatpush1.bf16.msra.mxu0 0
    %234 = vmatprep.subr.bf16.mxu0 0
    %235 = vmatpush1.bf16.msra.mxu0 0
    %236 = vmatprep.subr.bf16.mxu0 0
    %237 = vmatpush1.bf16.msra.mxu0 0
    %238 = vmatprep.subr.bf16.mxu0 0
    %239 = vmatpush1.bf16.msra.mxu0 0
    %240 = vmatprep.subr.bf16.mxu0 0
    %241 = vmatpush1.bf16.msra.mxu0 0
    %242 = vmatprep.subr.bf16.mxu0 0
    %243 = vmatpush1.bf16.msra.mxu0 0
    %244 = vmatprep.subr.bf16.mxu0 0
    %245 = vmatpush1.bf16.msra.mxu0 0
    %246 = vmatprep.subr.bf16.mxu0 0
    %247 = vmatpush1.bf16.msra.mxu0 0
    %248 = vmatprep.subr.bf16.mxu0 0
    %249 = vmatpush1.bf16.msra.mxu0 0
    %250 = vmatprep.mubr.bf16.mxu0 0
    %251 = vmatmul.mubr.bf16.gmra.mrb[0].mxu0 %v169
    %v252 = vpop.f32.mrb[0].mxu0
    %v253 = vadd.f32 %v213, %v252
    %v254 = vpop.f32.mrb[0].mxu0
    %v255 = vpop.f32.mrb[0].mxu0
    %v256 = vpop.f32.mrb[0].mxu0
    %257 = vdwg.mxu0
    %v258 = vmax.f32 %v253, 0.0
    %v259 = vpack.c.bf16 %v258, %v258
    %v260 = vld [vmem:[%s3] sm:$0xff]
    %v261 = vld [vmem:[%s3 + $0x8] sm:$0xff]
    %v262 = vld [vmem:[%s3 + $0x10] sm:$0xff]
    %v263 = vld [vmem:[%s3 + $0x18] sm:$0xff]
    %v264 = vld [vmem:[%s3 + $0x20] sm:$0xff]
    %v265 = vld [vmem:[%s3 + $0x28] sm:$0xff]
    %v266 = vld [vmem:[%s3 + $0x30] sm:$0xff]
    %v267 = vld [vmem:[%s3 + $0x38] sm:$0xff]
    %v268 = vld [vmem:[%s3 + $0x40] sm:$0xff]
    %v269 = vld [vmem:[%s3 + $0x48] sm:$0xff]
    %v270 = vld [vmem:[%s3 + $0x50] sm:$0xff]
    %v271 = vld [vmem:[%s3 + $0x58] sm:$0xff]
    %v272 = vld [vmem:[%s3 + $0x60] sm:$0xff]
    %v273 = vld [vmem:[%s3 + $0x68] sm:$0xff]
    %v274 = vld [vmem:[%s3 + $0x70] sm:$0xff]
    %v275 = vld [vmem:[%s3 + $0x78] sm:$0xff]
    %v276 = vld [vmem:[%s4] sm:$0x3]
    %v278 = vlaneseq
    %v279 = vshrl.u32 %v278, 7
    %v280 = vsub.s32 0, %v279
    %v281 = vrot.slane %v276, %v280
    %v282 = vlaneseq
    %v283 = vshrl.u32 %v282, 7
    %v284 = vsub.s32 1, %v283
    %v285 = vrot.slane %v276, %v284
    %v304 = vunpack.c.l.b16 %v260
    %v305 = vunpack.c.h.b16 %v260
    %v306 = vunpack.c.l.b16 %v261
    %v307 = vunpack.c.h.b16 %v261
    %v308 = vunpack.c.l.b16 %v262
    %v309 = vunpack.c.h.b16 %v262
    %v310 = vunpack.c.l.b16 %v263
    %v311 = vunpack.c.h.b16 %v263
    %v312 = vunpack.c.l.b16 %v264
    %v313 = vunpack.c.h.b16 %v264
    %v314 = vunpack.c.l.b16 %v265
    %v315 = vunpack.c.h.b16 %v265
    %v316 = vunpack.c.l.b16 %v266
    %v317 = vunpack.c.h.b16 %v266
    %v318 = vunpack.c.l.b16 %v267
    %v319 = vunpack.c.h.b16 %v267
    %v320 = vunpack.c.l.b16 %v268
    %v321 = vunpack.c.h.b16 %v268
    %v322 = vunpack.c.l.b16 %v269
    %v323 = vunpack.c.h.b16 %v269
    %v324 = vunpack.c.l.b16 %v270
    %v325 = vunpack.c.h.b16 %v270
    %v326 = vunpack.c.l.b16 %v271
    %v327 = vunpack.c.h.b16 %v271
    %v328 = vunpack.c.l.b16 %v272
    %v329 = vunpack.c.h.b16 %v272
    %v330 = vunpack.c.l.b16 %v273
    %v331 = vunpack.c.h.b16 %v273
    %v332 = vunpack.c.l.b16 %v274
    %v333 = vunpack.c.h.b16 %v274
    %v334 = vunpack.c.l.b16 %v275
    %v335 = vunpack.c.h.b16 %v275
    %v336 = vpack.c.b16 %v306, %v304
    %v337 = vpack.c.b16 %v307, %v305
    %v338 = vpack.c.b16 %v310, %v308
    %v339 = vpack.c.b16 %v311, %v309
    %v340 = vpack.c.b16 %v314, %v312
    %v341 = vpack.c.b16 %v315, %v313
    %v342 = vpack.c.b16 %v318, %v316
    %v343 = vpack.c.b16 %v319, %v317
    %v344 = vpack.c.b16 %v322, %v320
    %v345 = vpack.c.b16 %v323, %v321
    %v346 = vpack.c.b16 %v326, %v324
    %v347 = vpack.c.b16 %v327, %v325
    %v348 = vpack.c.b16 %v330, %v328
    %v349 = vpack.c.b16 %v331, %v329
    %v350 = vpack.c.b16 %v334, %v332
    %v351 = vpack.c.b16 %v335, %v333
    %368 = vmatprep.subr.bf16.mxu0 %v337
    %369 = vmatpush1.bf16.msra.mxu0 %v336
    %370 = vmatprep.subr.bf16.mxu0 %v339
    %371 = vmatpush1.bf16.msra.mxu0 %v338
    %372 = vmatprep.subr.bf16.mxu0 %v341
    %373 = vmatpush1.bf16.msra.mxu0 %v340
    %374 = vmatprep.subr.bf16.mxu0 %v343
    %375 = vmatpush1.bf16.msra.mxu0 %v342
    %376 = vmatprep.subr.bf16.mxu0 %v345
    %377 = vmatpush1.bf16.msra.mxu0 %v344
    %378 = vmatprep.subr.bf16.mxu0 %v347
    %379 = vmatpush1.bf16.msra.mxu0 %v346
    %380 = vmatprep.subr.bf16.mxu0 %v349
    %381 = vmatpush1.bf16.msra.mxu0 %v348
    %382 = vmatprep.subr.bf16.mxu0 %v351
    %383 = vmatpush1.bf16.msra.mxu0 %v350
    %384 = vmatprep.subr.bf16.mxu0 0
    %385 = vmatpush1.bf16.msra.mxu0 0
    %386 = vmatprep.subr.bf16.mxu0 0
    %387 = vmatpush1.bf16.msra.mxu0 0
    %388 = vmatprep.subr.bf16.mxu0 0
    %389 = vmatpush1.bf16.msra.mxu0 0
    %390 = vmatprep.subr.bf16.mxu0 0
    %391 = vmatpush1.bf16.msra.mxu0 0
    %392 = vmatprep.subr.bf16.mxu0 0
    %393 = vmatpush1.bf16.msra.mxu0 0
    %394 = vmatprep.subr.bf16.mxu0 0
    %395 = vmatpush1.bf16.msra.mxu0 0
    %396 = vmatprep.subr.bf16.mxu0 0
    %397 = vmatpush1.bf16.msra.mxu0 0
    %398 = vmatprep.subr.bf16.mxu0 0
    %399 = vmatpush1.bf16.msra.mxu0 0
    %400 = vmatprep.mubr.bf16.mxu0 0
    %401 = vmatmul.mubr.bf16.gmra.mrb[0].mxu0 %v259
    %v402 = vpop.f32.mrb[0].mxu0
    %v403 = vadd.f32 %v281, %v402
    %v404 = vpop.f32.mrb[0].mxu0
    %v405 = vadd.f32 %v285, %v404
    %v406 = vpop.f32.mrb[0].mxu0
    %v407 = vpop.f32.mrb[0].mxu0
    %408 = vdwg.mxu0
    %409 = vst [vmem:[#allocation2] sm:$0xff] %v403
    %vm410 = vcmask 523264
    %411 = vst.msk [vmem:[#allocation2 + $0x8] sm:$0xff] %vm410, %v405
    // Predicated region
    $region22: #{encoder_forward.1} parent=1 // pred_check
      _
    $region23: #{encoder_forward.1} parent=1 // pred_check_branch
      %413 = sbr.rel (0) target = $region25
    $region24: #{encoder_forward.1} parent=1 // pred_region
      %s415 = ssub.s32 256, 256
      %416 = vsyncadd [#allocation3], %s415
      %s418 = sshll.u32 [#allocation2], 4
      %s419 = int_to_ptr.vmem [resolvable:$true] %s418
      %421 = dma.vmem_to_hbm [thread:$0]  %s419, 256, %s5, [#allocation3]
    $region25: #{encoder_forward.1} parent=1 // pred_fallthru
      _
    // Predicated region
    $region26: #{encoder_forward.1} parent=1 // pred_check
      _
    $region27: #{encoder_forward.1} parent=1 // pred_check_branch
      %423 = sbr.rel (0) target = $region29
    $region28: #{encoder_forward.1} parent=1 // pred_region
      %424 = dma.done [#allocation3], 256
    $region29: #{encoder_forward.1} parent=1 // pred_fallthru
      _
    %425 = vsyncpa [#allocation3], 1

</llo_original>
